<compile_context>
chip_gen: v7x
topology: tpu7x:2x2x1
jax: 0.10.0
libtpu: 0.0.40
codegen_flags: <defaults>
</compile_context>

<pallas_src>
import numpy as np
import jax
import jax.numpy as jnp
from jax import lax
from jax.experimental import pallas as pl
from jax.experimental.pallas import tpu as pltpu


# ----------------------------------------------------------------------------
# Fused Pallas kernel: one (batch, passage-tile) grid cell.
# ----------------------------------------------------------------------------
def word_attention_kernel(p_ref, qd_ref, q_ref, qmask_ref, w_ref, b_ref, o_ref):
    """Shapes seen by the kernel (batch dim squeezed by BlockSpec):

    p_ref:     (TP, E)  passage tile (dropout-scaled in training)
    qd_ref:    (Q, E)   question used for Wq (dropout-scaled in training)
    q_ref:     (Q, E)   original question, used for the output bmm
    qmask_ref: (1, Q)   1.0 where the question position is MASKED
    w_ref:     (E, H)   shared projection weight (pre-transposed)
    b_ref:     (1, H)   shared projection bias
    o_ref:     (TP, E)  output tile
    """
    w = w_ref[...]
    b = b_ref[...]

    # Shared Linear + ReLU on the MXU, f32 accumulate.
    wp = jnp.maximum(
        jnp.dot(p_ref[...], w, preferred_element_type=jnp.float32) + b, 0.0)
    wq = jnp.maximum(
        jnp.dot(qd_ref[...], w, preferred_element_type=jnp.float32) + b, 0.0)

    # scores[p, q] = <wp[p], wq[q]> : contract on H, no materialized transpose.
    scores = lax.dot_general(
        wp, wq, (((1,), (1,)), ((), ())),
        preferred_element_type=jnp.float32)                       # (TP, Q)

    # masked_fill_(q_mask, -inf) + softmax over the question axis.
    scores = jnp.where(qmask_ref[...] > 0.5, -jnp.inf, scores)
    m = jnp.max(scores, axis=-1, keepdims=True)
    e = jnp.exp(scores - m)
    alpha = e / jnp.sum(e, axis=-1, keepdims=True)

    # output = alpha @ question (original question, as in the PyTorch code).
    q = q_ref[...]
    out = jnp.dot(alpha.astype(q.dtype), q, preferred_element_type=jnp.float32)
    o_ref[...] = out.astype(o_ref.dtype)


# ----------------------------------------------------------------------------
# pallas_call wrapper with grid / BlockSpecs / padding.
# ----------------------------------------------------------------------------
def word_attention_forward(d_passage, d_question, question, q_mask, W, b,
                           *, tile_p=None):
    B, P, E = d_passage.shape
    Q = d_question.shape[1]
    H = W.shape[1]

    if tile_p is None:
        # Biggest tile that is sublane-aligned; cap so VMEM use stays small
        # even with double buffering on v7x's 64 MiB.
        tile_p = min(256, max(8, ((P + 7) // 8) * 8))
    n_p = -(-P // tile_p)              # cdiv
    P_pad = n_p * tile_p
    if P_pad != P:
        d_passage = jnp.pad(d_passage, ((0, 0), (0, P_pad - P), (0, 0)))

    qmask3 = q_mask.astype(jnp.float32).reshape(B, 1, Q)

    flops = 2 * B * (P_pad * E * H          # Wp
                     + n_p * Q * E * H      # Wq (recomputed per passage tile)
                     + P_pad * Q * H        # scores
                     + P_pad * Q * E)       # output bmm
    bytes_accessed = 4 * (2 * B * P_pad * E + 2 * B * Q * E + B * Q + E * H + H)
    cost = pl.CostEstimate(flops=flops,
                           transcendentals=B * P_pad * Q,
                           bytes_accessed=bytes_accessed)

    out = pl.pallas_call(
        word_attention_kernel,
        out_shape=jax.ShapeDtypeStruct((B, P_pad, E), jnp.float32),
        grid=(B, n_p),
        in_specs=[
            pl.BlockSpec((None, tile_p, E), lambda bi, pi: (bi, pi, 0)),
            pl.BlockSpec((None, Q, E), lambda bi, pi: (bi, 0, 0)),
            pl.BlockSpec((None, Q, E), lambda bi, pi: (bi, 0, 0)),
            pl.BlockSpec((None, 1, Q), lambda bi, pi: (bi, 0, 0)),
            pl.BlockSpec((E, H), lambda bi, pi: (0, 0)),
            pl.BlockSpec((1, H), lambda bi, pi: (0, 0)),
        ],
        out_specs=pl.BlockSpec((None, tile_p, E), lambda bi, pi: (bi, pi, 0)),
        compiler_params=pltpu.CompilerParams(
            dimension_semantics=("parallel", "parallel")),
        cost_estimate=cost,
    )(d_passage, d_question, question, qmask3, W, b)

    if P_pad != P:
        out = out[:, :P, :]
    return out


# ----------------------------------------------------------------------------
# Module: parameters + forward (mirrors the PyTorch WordAttention).
# ----------------------------------------------------------------------------
class WordAttentionPallas:
    def __init__(self, key, input_size, hidden_size, dropout,
                 use_bf16_mxu=False):
        self.input_size = input_size
        self.hidden_size = hidden_size
        self.dropout = dropout
        self.use_bf16_mxu = use_bf16_mxu
        # xavier_uniform_ on a (H, E) Linear weight == U(-b, b), b=sqrt(6/(E+H)).
        # Stored pre-transposed as (E, H) so the kernel computes x @ W directly.
        bound = float(np.sqrt(6.0 / (input_size + hidden_size)))
        self.W = jax.random.uniform(key, (input_size, hidden_size),
                                    jnp.float32, -bound, bound)
        self.b = jnp.full((1, hidden_size), 0.1, jnp.float32)

    def __call__(self, passage, p_mask, question, q_mask,
                 is_training=False, dropout_rng=None, tile_p=None):
        del p_mask  # unused, exactly as in the PyTorch forward
        if is_training and self.dropout > 0.0:
            keep_prob = 1.0 - self.dropout
            B, _, E = passage.shape
            u = jax.random.uniform(dropout_rng, (B, 1, E), jnp.float32)
            binary = jnp.floor(keep_prob + u)     # 1 w.p. keep_prob, shared P/Q
            d_passage = passage / keep_prob * binary
            d_question = question / keep_prob * binary
        else:
            d_passage = passage
            d_question = question

        W, b = self.W, self.b
        if self.use_bf16_mxu:
            # v6e/v7x: bf16 MXU inputs, f32 accumulate + f32 softmax in-kernel.
            d_passage = d_passage.astype(jnp.bfloat16)
            d_question = d_question.astype(jnp.bfloat16)
            W = W.astype(jnp.bfloat16)

        # TODO(synk): for very long questions, add flash-style tiling over Q
        # with a running max/sum instead of keeping the full Q block in VMEM.
        return word_attention_forward(d_passage, d_question, question, q_mask,
                                      W, b, tile_p=tile_p)


# ----------------------------------------------------------------------------
# Pure-JAX reference (eval path) for the correctness check.
# ----------------------------------------------------------------------------
def reference_forward(model, passage, p_mask, question, q_mask):
    del p_mask
    Wp = jax.nn.relu(passage @ model.W + model.b)
    Wq = jax.nn.relu(question @ model.W + model.b)
    scores = jnp.einsum("bph,bqh->bpq", Wp, Wq)
    scores = jnp.where(q_mask.astype(bool)[:, None, :], -jnp.inf, scores)
    alpha = jax.nn.softmax(scores, axis=-1)
    return jnp.einsum("bpq,bqe->bpe", alpha, question)


if __name__ == "__main__":
    key = jax.random.PRNGKey(0)
    k_w, k_p, k_q = jax.random.split(key, 3)

    B, P, Q, E, H = 2, 12, 8, 32, 32
    dropout = 0.3

    model = WordAttentionPallas(k_w, input_size=E, hidden_size=H,
                                dropout=dropout)

    passage = jax.random.normal(k_p, (B, P, E), jnp.float32)
    question = jax.random.normal(k_q, (B, Q, E), jnp.float32)
    p_mask = jnp.zeros((B, P), jnp.bool_)
    # Mask the last two question positions of each batch element.
    q_mask = jnp.zeros((B, Q), jnp.bool_).at[:, Q - 2:].set(True)

    # tile_p=8 so the grid really tiles P (12 -> padded 16 -> 2 tiles of 8).
    out = model(passage, p_mask, question, q_mask, is_training=False, tile_p=8)
    out = jax.block_until_ready(out)
    assert out.shape == (B, P, E), out.shape

    ref = jax.block_until_ready(
        reference_forward(model, passage, p_mask, question, q_mask))
    np.testing.assert_allclose(np.asarray(out), np.asarray(ref),
                               rtol=1e-4, atol=1e-4)
    print("KERNEL_OK")
</pallas_src>

<mosaic_0001>
module attributes {stable_mosaic.version = 11 : i64} {
  func.func @word_attention_kernel(%arg0: i32, %arg1: i32, %arg2: memref<1x8x32xf32, #tpu.memory_space<vmem>>, %arg3: memref<1x8x32xf32, #tpu.memory_space<vmem>>, %arg4: memref<1x8x32xf32, #tpu.memory_space<vmem>>, %arg5: memref<1x1x8xf32, #tpu.memory_space<vmem>>, %arg6: memref<32x32xf32, #tpu.memory_space<vmem>>, %arg7: memref<1x32xf32, #tpu.memory_space<vmem>>, %arg8: memref<1x8x32xf32, #tpu.memory_space<vmem>>) attributes {dimension_semantics = [#tpu.dimension_semantics<parallel>, #tpu.dimension_semantics<parallel>], iteration_bounds = array<i64: 2, 2>, scalar_prefetch = 0 : i64, scratch_operands = 0 : i64, tpu.core_type = #tpu.core_type<tc>, window_params = [{transform_indices = @transform_0, window_bounds = array<i64: 1, 8, 32>}, {transform_indices = @transform_1, window_bounds = array<i64: 1, 8, 32>}, {transform_indices = @transform_2, window_bounds = array<i64: 1, 8, 32>}, {transform_indices = @transform_3, window_bounds = array<i64: 1, 1, 8>}, {pipeline_mode = #tpu.pipeline_mode<synchronous>, transform_indices = @transform_4, window_bounds = array<i64: 32, 32>}, {pipeline_mode = #tpu.pipeline_mode<synchronous>, transform_indices = @transform_5, window_bounds = array<i64: 1, 32>}, {transform_indices = @transform_6, window_bounds = array<i64: 1, 8, 32>}]} {
    %c0 = arith.constant 0 : index
    %c0_0 = arith.constant 0 : index
    %0 = vector.load %arg6[%c0, %c0_0] : memref<32x32xf32, #tpu.memory_space<vmem>>, vector<32x32xf32>
    %c0_1 = arith.constant 0 : index
    %c0_2 = arith.constant 0 : index
    %1 = vector.load %arg7[%c0_1, %c0_2] : memref<1x32xf32, #tpu.memory_space<vmem>>, vector<1x32xf32>
    %c0_3 = arith.constant 0 : index
    %c0_4 = arith.constant 0 : index
    %c0_5 = arith.constant 0 : index
    %2 = vector.load %arg2[%c0_3, %c0_4, %c0_5] : memref<1x8x32xf32, #tpu.memory_space<vmem>>, vector<1x8x32xf32>
    %3 = vector.shape_cast %2 : vector<1x8x32xf32> to vector<8x32xf32>
    %cst = arith.constant dense<0.000000e+00> : vector<8x32xf32>
    %4 = tpu.matmul %3, %0, %cst {dimension_numbers = #tpu.dot_dimension_numbers<[1], [0], [0], [1], [0, 0, 1, 1], [], []>} : vector<8x32xf32>, vector<32x32xf32>, vector<8x32xf32> -> vector<8x32xf32>
    %5 = vector.broadcast %1 : vector<1x32xf32> to vector<8x32xf32>
    %6 = arith.addf %4, %5 : vector<8x32xf32>
    %cst_6 = arith.constant 0.000000e+00 : f32
    %7 = vector.broadcast %cst_6 : f32 to vector<8x32xf32>
    %8 = arith.maximumf %6, %7 : vector<8x32xf32>
    %c0_7 = arith.constant 0 : index
    %c0_8 = arith.constant 0 : index
    %c0_9 = arith.constant 0 : index
    %9 = vector.load %arg3[%c0_7, %c0_8, %c0_9] : memref<1x8x32xf32, #tpu.memory_space<vmem>>, vector<1x8x32xf32>
    %10 = vector.shape_cast %9 : vector<1x8x32xf32> to vector<8x32xf32>
    %cst_10 = arith.constant dense<0.000000e+00> : vector<8x32xf32>
    %11 = tpu.matmul %10, %0, %cst_10 {dimension_numbers = #tpu.dot_dimension_numbers<[1], [0], [0], [1], [0, 0, 1, 1], [], []>} : vector<8x32xf32>, vector<32x32xf32>, vector<8x32xf32> -> vector<8x32xf32>
    %12 = vector.broadcast %1 : vector<1x32xf32> to vector<8x32xf32>
    %13 = arith.addf %11, %12 : vector<8x32xf32>
    %cst_11 = arith.constant 0.000000e+00 : f32
    %14 = vector.broadcast %cst_11 : f32 to vector<8x32xf32>
    %15 = arith.maximumf %13, %14 : vector<8x32xf32>
    %cst_12 = arith.constant dense<0.000000e+00> : vector<8x8xf32>
    %16 = tpu.matmul %8, %15, %cst_12 {dimension_numbers = #tpu.dot_dimension_numbers<[1], [1], [0], [0], [0, 0, 1, 0], [], []>} : vector<8x32xf32>, vector<8x32xf32>, vector<8x8xf32> -> vector<8x8xf32>
    %c0_13 = arith.constant 0 : index
    %c0_14 = arith.constant 0 : index
    %c0_15 = arith.constant 0 : index
    %17 = vector.load %arg5[%c0_13, %c0_14, %c0_15] : memref<1x1x8xf32, #tpu.memory_space<vmem>>, vector<1x1x8xf32>
    %18 = vector.shape_cast %17 : vector<1x1x8xf32> to vector<1x8xf32>
    %cst_16 = arith.constant 5.000000e-01 : f32
    %19 = vector.broadcast %cst_16 : f32 to vector<1x8xf32>
    %20 = arith.cmpf ogt, %18, %19 : vector<1x8xf32>
    %cst_17 = arith.constant 0xFF800000 : f32
    %21 = vector.shape_cast %20 : vector<1x8xi1> to vector<1x8xi1>
    %22 = vector.broadcast %21 : vector<1x8xi1> to vector<8x8xi1>
    %23 = vector.broadcast %cst_17 : f32 to vector<8x8xf32>
    %24 = arith.select %22, %23, %16 : vector<8x8xi1>, vector<8x8xf32>
    %cst_18 = arith.constant dense<0xFF800000> : vector<8xf32>
    %25 = vector.multi_reduction <maximumf>, %24, %cst_18 [1] : vector<8x8xf32> to vector<8xf32>
    %26 = vector.shape_cast %25 : vector<8xf32> to vector<8x1xf32>
    %27 = vector.broadcast %26 : vector<8x1xf32> to vector<8x8xf32>
    %28 = arith.subf %24, %27 : vector<8x8xf32>
    %29 = math.exp %28 : vector<8x8xf32>
    %cst_19 = arith.constant dense<0.000000e+00> : vector<8xf32>
    %30 = vector.multi_reduction <add>, %29, %cst_19 [1] : vector<8x8xf32> to vector<8xf32>
    %31 = vector.shape_cast %30 : vector<8xf32> to vector<8x1xf32>
    %32 = vector.broadcast %31 : vector<8x1xf32> to vector<8x8xf32>
    %33 = arith.divf %29, %32 : vector<8x8xf32>
    %c0_20 = arith.constant 0 : index
    %c0_21 = arith.constant 0 : index
    %c0_22 = arith.constant 0 : index
    %34 = vector.load %arg4[%c0_20, %c0_21, %c0_22] : memref<1x8x32xf32, #tpu.memory_space<vmem>>, vector<1x8x32xf32>
    %35 = vector.shape_cast %34 : vector<1x8x32xf32> to vector<8x32xf32>
    %cst_23 = arith.constant dense<0.000000e+00> : vector<8x32xf32>
    %36 = tpu.matmul %33, %35, %cst_23 {dimension_numbers = #tpu.dot_dimension_numbers<[1], [0], [0], [1], [0, 0, 1, 1], [], []>} : vector<8x8xf32>, vector<8x32xf32>, vector<8x32xf32> -> vector<8x32xf32>
    %c0_24 = arith.constant 0 : index
    %c0_25 = arith.constant 0 : index
    %c0_26 = arith.constant 0 : index
    %37 = vector.load %arg8[%c0_24, %c0_25, %c0_26] : memref<1x8x32xf32, #tpu.memory_space<vmem>>, vector<1x8x32xf32>
    %38 = vector.shape_cast %37 : vector<1x8x32xf32> to vector<8x32xf32>
    %39 = vector.shape_cast %36 : vector<8x32xf32> to vector<1x8x32xf32>
    tpu.vector_store %arg8[%c0_24, %c0_25, %c0_26], %39 {strides = array<i32>} : memref<1x8x32xf32, #tpu.memory_space<vmem>>, vector<1x8x32xf32>,
    return
  }
  func.func @transform_0(%arg0: i32, %arg1: i32) -> (i32, i32, i32) {
    %c0_i32 = arith.constant 0 : i32
    %c0_i32_0 = arith.constant 0 : i32
    return %arg0, %arg1, %c0_i32 : i32, i32, i32
  }
  func.func @transform_1(%arg0: i32, %arg1: i32) -> (i32, i32, i32) {
    %c0_i32 = arith.constant 0 : i32
    %c0_i32_0 = arith.constant 0 : i32
    %c0_i32_1 = arith.constant 0 : i32
    return %arg0, %c0_i32, %c0_i32_0 : i32, i32, i32
  }
  func.func @transform_2(%arg0: i32, %arg1: i32) -> (i32, i32, i32) {
    %c0_i32 = arith.constant 0 : i32
    %c0_i32_0 = arith.constant 0 : i32
    %c0_i32_1 = arith.constant 0 : i32
    return %arg0, %c0_i32, %c0_i32_0 : i32, i32, i32
  }
  func.func @transform_3(%arg0: i32, %arg1: i32) -> (i32, i32, i32) {
    %c0_i32 = arith.constant 0 : i32
    %c0_i32_0 = arith.constant 0 : i32
    %c0_i32_1 = arith.constant 0 : i32
    return %arg0, %c0_i32, %c0_i32_0 : i32, i32, i32
  }
  func.func @transform_4(%arg0: i32, %arg1: i32) -> (i32, i32) {
    %c0_i32 = arith.constant 0 : i32
    %c0_i32_0 = arith.constant 0 : i32
    %c0_i32_1 = arith.constant 0 : i32
    return %c0_i32, %c0_i32_0 : i32, i32
  }
  func.func @transform_5(%arg0: i32, %arg1: i32) -> (i32, i32) {
    %c0_i32 = arith.constant 0 : i32
    %c0_i32_0 = arith.constant 0 : i32
    %c0_i32_1 = arith.constant 0 : i32
    return %c0_i32, %c0_i32_0 : i32, i32
  }
  func.func @transform_6(%arg0: i32, %arg1: i32) -> (i32, i32, i32) {
    %c0_i32 = arith.constant 0 : i32
    %c0_i32_0 = arith.constant 0 : i32
    return %arg0, %arg1, %c0_i32 : i32, i32, i32
  }
}

</mosaic_0001>

<llo_original>
// kernel: tpu_custom_call.1
$region0: #{tpu_custom_call.1}
  #allocation0 [shape = 'u32[]', space=smem, size = 0x4, offset = 0x4, fixed_abs, tag = 'smem constant byte address 0x4 - core index']
  #allocation1 [shape = 'u32[144,128]{1,0:T(1,128)}', space=vmem, size = 0x12000, scoped, tag = 'internal scratch']
  %s0 = inlined_call_operand.hbm [shape: f32[2,16,32], index: 0, kind: input, shape index: {}]
  %s1 = inlined_call_operand.hbm [shape: f32[2,8,32], index: 1, kind: input, shape index: {}]
  %s2 = inlined_call_operand.hbm [shape: f32[2,8,32], index: 2, kind: input, shape index: {}]
  %s3 = inlined_call_operand.vmem [shape: f32[2,1,8], index: 3, kind: input, shape index: {}]
  %s4 = inlined_call_operand.hbm [shape: f32[32,32], index: 4, kind: input, shape index: {}]
  %s5 = inlined_call_operand.vmem [shape: f32[1,32], index: 5, kind: input, shape index: {}]
  %s6 = inlined_call_operand.hbm [shape: f32[2,16,32], index: 6, kind: output, shape index: {}]
  %s7 = sld [smem:[#allocation0]]
  $region73: #{tpu_custom_call.1} parent=0
    _
  %s9 = ssub.s32 1, %s7
  %s10 = scalar_select 0, %s9, %s7
  $region1: #{tpu_custom_call.1} parent=0
    #allocation2 [shape = 'u8[8192]{0}', space=vmem, size = 0x2000, scoped, tag = 'input window, operand 0']
    #allocation3 [shape = 's32[2]{0}', space=sflag, size = 0x8, scoped, tag = 'scoped memory for tpu_custom_call.1']
    #allocation4 [shape = 's32[2]{0}', space=sflag, size = 0x8, scoped, tag = 'scoped memory for tpu_custom_call.1']
    #allocation5 [shape = 'u8[8192]{0}', space=vmem, size = 0x2000, scoped, tag = 'input window, operand 1']
    #allocation6 [shape = 's32[2]{0}', space=sflag, size = 0x8, scoped, tag = 'scoped memory for tpu_custom_call.1']
    #allocation7 [shape = 'u8[8192]{0}', space=vmem, size = 0x2000, scoped, tag = 'input window, operand 2']
    #allocation8 [shape = 'u8[16384]{0}', space=vmem, size = 0x4000, scoped, tag = 'input window, operand 4, single buffered']
    #allocation9 [shape = 's32[1]{0}', space=sflag, size = 0x4, scoped, tag = 'scoped memory for tpu_custom_call.1']
    #allocation10 [shape = 'u8[8192]{0}', space=vmem, size = 0x2000, scoped, tag = 'output window, operand 0']
    %11 = vsyncpa [#allocation3], 0
    %s12 = scalar_lea.sflag [#allocation3], 1
    %13 = vsyncpa %s12, 0
    %14 = vsyncpa [#allocation6], 0
    %s15 = scalar_lea.sflag [#allocation6], 1
    %16 = vsyncpa %s15, 0
    %17 = vsyncpa [#allocation9], 0
    %18 = vsyncpa [#allocation4], 0
    %s19 = scalar_lea.sflag [#allocation4], 1
    %20 = vsyncpa %s19, 0
    loop: start=0, step=1, limit=6
    $region2: #{tpu_custom_call.1} parent=1 // loop_pre_header
      _
    $region3: #{tpu_custom_call.1} parent=1 // loop_header
      %s22 = sphi 0, %s26
      %p23 = scmp.ge.s32.totalorder %s22, 6
      %s29 = sphi 0, %s41
      %s30 = sphi 0, %s37
      %s31 = sphi 0, %s29
      %s32 = sphi 0, %s30
      %s33 = sphi 0, %s31
      %s34 = sphi 0, %s32
      %s46 = sphi 0, %s48
      %s49 = sphi 0, %s46
      %s50 = sphi 0, %s49
      %s66 = sphi 0, %s50
      %s72 = sphi 0, %s74
      %s75 = sphi 0, %s72
      %s76 = sphi 0, %s75
      %s92 = sphi 0, %s76
      %s98 = sphi 0, %s100
      %s101 = sphi 0, %s98
      %s102 = sphi 0, %s101
      %s118 = sphi 0, %s102
      %s124 = sphi 0, %s126
      %s127 = sphi 0, %s124
      %s128 = sphi 0, %s127
      %s144 = sphi 0, %s128
      %s148 = sphi 0, %s148
      %s150 = sphi 0, %s148
      %s151 = sphi 0, %s150
      %s165 = sphi 0, %s151
      %s169 = sphi 0, %s169
      %s171 = sphi 0, %s169
      %s172 = sphi 0, %s171
      %s186 = sphi 0, %s172
      %s194 = sphi 0, %s196
      %s197 = sphi 0, %s194
      %s198 = sphi 0, %s197
      %s214 = sphi 0, %s198
    $region4: #{tpu_custom_call.1} parent=1 // loop_header_branch
      %25 = sbr.rel (%p23) target = $region8
    $region5: #{tpu_custom_call.1} parent=1 // loop_body
      %s27 = ssub.s32 %s22, 1
      %s28 = ssub.s32 %s22, 2
      %s35 = sadd.s32 1, %s30
      %p36 = scmp.ge.s32.totalorder %s35, 2
      %s37 = scalar_select %p36, 0, %s35
      %s38 = sadd.s32 1, %s29
      %s39 = scalar_select %p36, %s38, %s29
      %p40 = scmp.ge.s32.totalorder %s39, 2
      %s41 = scalar_select %p40, 0, %s39
      %s42 = ssub.s32 %s29, %s41
      %s43 = ssub.s32 %s30, %s37
      %s44 = sor.u32 %s42, %s43
      %p45 = scmp.eq.s32.totalorder %s44, 0
      %s47 = sadd.s32 %s46, 1
      %s48 = scalar_select %p45, %s46, %s47
      %p51 = pneg %p45
      %p52 = scmp.eq.s32.totalorder %s22, 3
      %p53 = por %p51, %p52
      %p54 = scmp.ne.s32.totalorder %s46, %s49
      %p55 = scmp.eq.s32.totalorder %s22, 0
      %p56 = por %p54, %p55
      %p57 = scmp.ne.s32.totalorder %s46, %s49
      %p58 = scmp.eq.s32.totalorder %s27, 3
      %p59 = por %p57, %p58
      %p60 = scmp.ne.s32.totalorder %s49, %s50
      %p61 = scmp.eq.s32.totalorder %s27, 0
      %p62 = por %p60, %p61
      %p63 = scmp.ne.s32.totalorder %s49, %s50
      %p64 = scmp.eq.s32.totalorder %s28, 3
      %p65 = por %p63, %p64
      %p67 = scmp.ne.s32.totalorder %s50, %s66
      %p68 = scmp.eq.s32.totalorder %s28, 0
      %p69 = por %p67, %p68
      %s70 = ssub.s32 %s29, %s41
      %p71 = scmp.eq.s32.totalorder %s70, 0
      %s73 = sadd.s32 %s72, 1
      %s74 = scalar_select %p71, %s72, %s73
      %p77 = pneg %p71
      %p78 = scmp.eq.s32.totalorder %s22, 3
      %p79 = por %p77, %p78
      %p80 = scmp.ne.s32.totalorder %s72, %s75
      %p81 = scmp.eq.s32.totalorder %s22, 0
      %p82 = por %p80, %p81
      %p83 = scmp.ne.s32.totalorder %s72, %s75
      %p84 = scmp.eq.s32.totalorder %s27, 3
      %p85 = por %p83, %p84
      %p86 = scmp.ne.s32.totalorder %s75, %s76
      %p87 = scmp.eq.s32.totalorder %s27, 0
      %p88 = por %p86, %p87
      %p89 = scmp.ne.s32.totalorder %s75, %s76
      %p90 = scmp.eq.s32.totalorder %s28, 3
      %p91 = por %p89, %p90
      %p93 = scmp.ne.s32.totalorder %s76, %s92
      %p94 = scmp.eq.s32.totalorder %s28, 0
      %p95 = por %p93, %p94
      %s96 = ssub.s32 %s29, %s41
      %p97 = scmp.eq.s32.totalorder %s96, 0
      %s99 = sadd.s32 %s98, 1
      %s100 = scalar_select %p97, %s98, %s99
      %p103 = pneg %p97
      %p104 = scmp.eq.s32.totalorder %s22, 3
      %p105 = por %p103, %p104
      %p106 = scmp.ne.s32.totalorder %s98, %s101
      %p107 = scmp.eq.s32.totalorder %s22, 0
      %p108 = por %p106, %p107
      %p109 = scmp.ne.s32.totalorder %s98, %s101
      %p110 = scmp.eq.s32.totalorder %s27, 3
      %p111 = por %p109, %p110
      %p112 = scmp.ne.s32.totalorder %s101, %s102
      %p113 = scmp.eq.s32.totalorder %s27, 0
      %p114 = por %p112, %p113
      %p115 = scmp.ne.s32.totalorder %s101, %s102
      %p116 = scmp.eq.s32.totalorder %s28, 3
      %p117 = por %p115, %p116
      %p119 = scmp.ne.s32.totalorder %s102, %s118
      %p120 = scmp.eq.s32.totalorder %s28, 0
      %p121 = por %p119, %p120
      %s122 = ssub.s32 %s29, %s41
      %p123 = scmp.eq.s32.totalorder %s122, 0
      %s125 = sadd.s32 %s124, 1
      %s126 = scalar_select %p123, %s124, %s125
      %p129 = pneg %p123
      %p130 = scmp.eq.s32.totalorder %s22, 3
      %p131 = por %p129, %p130
      %p132 = scmp.ne.s32.totalorder %s124, %s127
      %p133 = scmp.eq.s32.totalorder %s22, 0
      %p134 = por %p132, %p133
      %p135 = scmp.ne.s32.totalorder %s124, %s127
      %p136 = scmp.eq.s32.totalorder %s27, 3
      %p137 = por %p135, %p136
      %p138 = scmp.ne.s32.totalorder %s127, %s128
      %p139 = scmp.eq.s32.totalorder %s27, 0
      %p140 = por %p138, %p139
      %p141 = scmp.ne.s32.totalorder %s127, %s128
      %p142 = scmp.eq.s32.totalorder %s28, 3
      %p143 = por %p141, %p142
      %p145 = scmp.ne.s32.totalorder %s128, %s144
      %p146 = scmp.eq.s32.totalorder %s28, 0
      %p147 = por %p145, %p146
      %s149 = sadd.s32 %s148, 1
      %p152 = scmp.eq.s32.totalorder %s22, 3
      %p153 = scmp.ne.s32.totalorder %s148, %s150
      %p154 = scmp.eq.s32.totalorder %s22, 0
      %p155 = por %p153, %p154
      %p156 = scmp.ne.s32.totalorder %s148, %s150
      %p157 = scmp.eq.s32.totalorder %s27, 3
      %p158 = por %p156, %p157
      %p159 = scmp.ne.s32.totalorder %s150, %s151
      %p160 = scmp.eq.s32.totalorder %s27, 0
      %p161 = por %p159, %p160
      %p162 = scmp.ne.s32.totalorder %s150, %s151
      %p163 = scmp.eq.s32.totalorder %s28, 3
      %p164 = por %p162, %p163
      %p166 = scmp.ne.s32.totalorder %s151, %s165
      %p167 = scmp.eq.s32.totalorder %s28, 0
      %p168 = por %p166, %p167
      %s170 = sadd.s32 %s169, 1
      %p173 = scmp.eq.s32.totalorder %s22, 3
      %p174 = scmp.ne.s32.totalorder %s169, %s171
      %p175 = scmp.eq.s32.totalorder %s22, 0
      %p176 = por %p174, %p175
      %p177 = scmp.ne.s32.totalorder %s169, %s171
      %p178 = scmp.eq.s32.totalorder %s27, 3
      %p179 = por %p177, %p178
      %p180 = scmp.ne.s32.totalorder %s171, %s172
      %p181 = scmp.eq.s32.totalorder %s27, 0
      %p182 = por %p180, %p181
      %p183 = scmp.ne.s32.totalorder %s171, %s172
      %p184 = scmp.eq.s32.totalorder %s28, 3
      %p185 = por %p183, %p184
      %p187 = scmp.ne.s32.totalorder %s172, %s186
      %p188 = scmp.eq.s32.totalorder %s28, 0
      %p189 = por %p187, %p188
      %s190 = ssub.s32 %s29, %s41
      %s191 = ssub.s32 %s30, %s37
      %s192 = sor.u32 %s190, %s191
      %p193 = scmp.eq.s32.totalorder %s192, 0
      %s195 = sadd.s32 %s194, 1
      %s196 = scalar_select %p193, %s194, %s195
      %p199 = pneg %p193
      %p200 = scmp.eq.s32.totalorder %s22, 3
      %p201 = por %p199, %p200
      %p202 = scmp.ne.s32.totalorder %s194, %s197
      %p203 = scmp.eq.s32.totalorder %s22, 0
      %p204 = por %p202, %p203
      %p205 = scmp.ne.s32.totalorder %s194, %s197
      %p206 = scmp.eq.s32.totalorder %s27, 3
      %p207 = por %p205, %p206
      %p208 = scmp.ne.s32.totalorder %s197, %s198
      %p209 = scmp.eq.s32.totalorder %s27, 0
      %p210 = por %p208, %p209
      %p211 = scmp.ne.s32.totalorder %s197, %s198
      %p212 = scmp.eq.s32.totalorder %s28, 3
      %p213 = por %p211, %p212
      %p215 = scmp.ne.s32.totalorder %s198, %s214
      %p216 = scmp.eq.s32.totalorder %s28, 0
      %p217 = por %p215, %p216
      %p218 = scmp.le.s32.totalorder 1, %s22
      %p219 = scmp.lt.s32.totalorder %s22, 5
      %p220 = pnand %p218, %p219
      %p221 = pneg %p220
      // Predicated region
      $region9: #{tpu_custom_call.1} parent=5 // pred_check
        _
      $region10: #{tpu_custom_call.1} parent=5 // pred_check_branch
        %223 = sbr.rel (%p220) target = $region12
      $region11: #{tpu_custom_call.1} parent=5 // pred_region
        %s224 = ssub.s32 %s22, 1
        // Predicated region
        $region13: #{tpu_custom_call.1} parent=11 // pred_check
          %p225 = pneg %p161
        $region14: #{tpu_custom_call.1} parent=11 // pred_check_branch
          %227 = sbr.rel (%p225) target = $region16
        $region15: #{tpu_custom_call.1} parent=11 // pred_region
          %s229 = ssub.s32 512, 512
          %230 = vsyncadd [#allocation9], %s229
          %s231 = sshll.u32 [#allocation8], 4
          %s232 = int_to_ptr.vmem [resolvable:$true] %s231
          %237 = dma.hbm_to_vmem [thread:$0]  %s4, 512, %s232, [#allocation9], 128, 128, 8
        $region16: #{tpu_custom_call.1} parent=11 // pred_fallthru
          _
        // Predicated region
        $region17: #{tpu_custom_call.1} parent=11 // pred_check
          %p238 = pneg %p182
        $region18: #{tpu_custom_call.1} parent=11 // pred_check_branch
          %240 = sbr.rel (%p238) target = $region20
        $region19: #{tpu_custom_call.1} parent=11 // pred_region
          _
        $region20: #{tpu_custom_call.1} parent=11 // pred_fallthru
          _
      $region12: #{tpu_custom_call.1} parent=5 // pred_fallthru
        _
      %p241 = scmp.lt.s32.totalorder %s22, 4
      // Predicated region
      $region21: #{tpu_custom_call.1} parent=5 // pred_check
        %p242 = pneg %p241
      $region22: #{tpu_custom_call.1} parent=5 // pred_check_branch
        %244 = sbr.rel (%p242) target = $region24
      $region23: #{tpu_custom_call.1} parent=5 // pred_region
        // Predicated region
        $region25: #{tpu_custom_call.1} parent=23 // pred_check
          %p245 = pneg %p56
        $region26: #{tpu_custom_call.1} parent=23 // pred_check_branch
          %247 = sbr.rel (%p245) target = $region28
        $region27: #{tpu_custom_call.1} parent=23 // pred_region
          %s248 = sand.u32 %s46, 1
          %s249 = scalar_lea.sflag [#allocation3], %s248
          %s250 = sand.u32 %s46, 1
          %s251 = smul.addr %s250, 8
          %s252 = scalar_lea.vmem [#allocation2], %s251
          %s254 = ssub.s32 128, 128
          %255 = vsyncadd %s249, %s254
          %s256 = smul.addr %s29, 2
          %s257 = sadd.s32 %s30, %s256
          %s258 = smul.addr %s257, 128
          %s259 = scalar_lea.hbm %s0, %s258
          %s261 = sshll.u32 %s252, 4
          %s262 = int_to_ptr.vmem [resolvable:$true] %s261
          %264 = dma.hbm_to_vmem [thread:$0]  %s259, 128, %s262, %s249
        $region28: #{tpu_custom_call.1} parent=23 // pred_fallthru
          _
        // Predicated region
        $region29: #{tpu_custom_call.1} parent=23 // pred_check
          %p265 = pneg %p82
        $region30: #{tpu_custom_call.1} parent=23 // pred_check_branch
          %267 = sbr.rel (%p265) target = $region32
        $region31: #{tpu_custom_call.1} parent=23 // pred_region
          %s268 = sand.u32 %s22, 1
          %s269 = scalar_lea.sflag [#allocation6], %s268
          %s270 = sand.u32 %s72, 1
          %s271 = smul.addr %s270, 8
          %s272 = scalar_lea.vmem [#allocation5], %s271
          %s274 = ssub.s32 128, 128
          %275 = vsyncadd %s269, %s274
          %s276 = smul.addr %s29, 128
          %s277 = scalar_lea.hbm %s1, %s276
          %s279 = sshll.u32 %s272, 4
          %s280 = int_to_ptr.vmem [resolvable:$true] %s279
          %282 = dma.hbm_to_vmem [thread:$0]  %s277, 128, %s280, %s269
        $region32: #{tpu_custom_call.1} parent=23 // pred_fallthru
          _
        // Predicated region
        $region33: #{tpu_custom_call.1} parent=23 // pred_check
          %p283 = pneg %p108
        $region34: #{tpu_custom_call.1} parent=23 // pred_check_branch
          %285 = sbr.rel (%p283) target = $region36
        $region35: #{tpu_custom_call.1} parent=23 // pred_region
          %s286 = sand.u32 %s22, 1
          %s287 = scalar_lea.sflag [#allocation6], %s286
          %s288 = sand.u32 %s98, 1
          %s289 = smul.addr %s288, 8
          %s290 = scalar_lea.vmem [#allocation7], %s289
          %s292 = ssub.s32 128, 128
          %293 = vsyncadd %s287, %s292
          %s294 = smul.addr %s29, 128
          %s295 = scalar_lea.hbm %s2, %s294
          %s297 = sshll.u32 %s290, 4
          %s298 = int_to_ptr.vmem [resolvable:$true] %s297
          %300 = dma.hbm_to_vmem [thread:$0]  %s295, 128, %s298, %s287
        $region36: #{tpu_custom_call.1} parent=23 // pred_fallthru
          _
        // Predicated region
        $region37: #{tpu_custom_call.1} parent=23 // pred_check
          %p301 = pneg %p134
        $region38: #{tpu_custom_call.1} parent=23 // pred_check_branch
          %303 = sbr.rel (%p301) target = $region40
        $region39: #{tpu_custom_call.1} parent=23 // pred_region
          %p304 = scmp.lt.s32.totalorder %s29, 1
          %s305 = scalar_select %p304, %s29, 1
          %s306 = scalar_lea.vmem %s3, %s305
        $region40: #{tpu_custom_call.1} parent=23 // pred_fallthru
          _
      $region24: #{tpu_custom_call.1} parent=5 // pred_fallthru
        _
      %p307 = scmp.le.s32.totalorder 1, %s22
      %p308 = scmp.lt.s32.totalorder %s22, 5
      %p309 = pnand %p307, %p308
      %p310 = pneg %p309
      // Predicated region
      $region41: #{tpu_custom_call.1} parent=5 // pred_check
        _
      $region42: #{tpu_custom_call.1} parent=5 // pred_check_branch
        %312 = sbr.rel (%p309) target = $region44
      $region43: #{tpu_custom_call.1} parent=5 // pred_region
        %s313 = ssub.s32 %s22, 1
        %s314 = sand.u32 %s49, 1
        %s315 = scalar_lea.sflag [#allocation3], %s314
        %s316 = sand.u32 %s49, 1
        %s317 = smul.addr %s316, 8
        %s318 = scalar_lea.vmem [#allocation2], %s317
        // Predicated region
        $region45: #{tpu_custom_call.1} parent=43 // pred_check
          %p319 = pneg %p62
        $region46: #{tpu_custom_call.1} parent=43 // pred_check_branch
          %321 = sbr.rel (%p319) target = $region48
        $region47: #{tpu_custom_call.1} parent=43 // pred_region
          %322 = dma.done %s315, 128
        $region48: #{tpu_custom_call.1} parent=43 // pred_fallthru
          _
        %s323 = sand.u32 %s27, 1
        %s324 = scalar_lea.sflag [#allocation6], %s323
        %s325 = sand.u32 %s75, 1
        %s326 = smul.addr %s325, 8
        %s327 = scalar_lea.vmem [#allocation5], %s326
        // Predicated region
        $region49: #{tpu_custom_call.1} parent=43 // pred_check
          %p328 = pneg %p88
        $region50: #{tpu_custom_call.1} parent=43 // pred_check_branch
          %330 = sbr.rel (%p328) target = $region52
        $region51: #{tpu_custom_call.1} parent=43 // pred_region
          %331 = dma.done %s324, 128
        $region52: #{tpu_custom_call.1} parent=43 // pred_fallthru
          _
        %s332 = sand.u32 %s27, 1
        %s333 = scalar_lea.sflag [#allocation6], %s332
        %s334 = sand.u32 %s101, 1
        %s335 = smul.addr %s334, 8
        %s336 = scalar_lea.vmem [#allocation7], %s335
        // Predicated region
        $region53: #{tpu_custom_call.1} parent=43 // pred_check
          %p337 = pneg %p114
        $region54: #{tpu_custom_call.1} parent=43 // pred_check_branch
          %339 = sbr.rel (%p337) target = $region56
        $region55: #{tpu_custom_call.1} parent=43 // pred_region
          %340 = dma.done %s333, 128
        $region56: #{tpu_custom_call.1} parent=43 // pred_fallthru
          _
        // Predicated region
        $region57: #{tpu_custom_call.1} parent=43 // pred_check
          %p341 = pneg %p161
        $region58: #{tpu_custom_call.1} parent=43 // pred_check_branch
          %343 = sbr.rel (%p341) target = $region60
        $region59: #{tpu_custom_call.1} parent=43 // pred_region
          %344 = dma.done [#allocation9], 512
        $region60: #{tpu_custom_call.1} parent=43 // pred_fallthru
          _
        %s345 = sand.u32 %s49, 1
        %s346 = scalar_lea.sflag [#allocation3], %s345
        %s347 = sand.u32 %s49, 1
        %s348 = smul.addr %s347, 8
        %s349 = scalar_lea.vmem [#allocation2], %s348
        %p350 = pneg %p62
        %p351 = pneg %p59
        %s352 = sand.u32 %s27, 1
        %s353 = scalar_lea.sflag [#allocation6], %s352
        %s354 = sand.u32 %s75, 1
        %s355 = smul.addr %s354, 8
        %s356 = scalar_lea.vmem [#allocation5], %s355
        %p357 = pneg %p88
        %p358 = pneg %p85
        %s359 = sand.u32 %s27, 1
        %s360 = scalar_lea.sflag [#allocation6], %s359
        %s361 = sand.u32 %s101, 1
        %s362 = smul.addr %s361, 8
        %s363 = scalar_lea.vmem [#allocation7], %s362
        %p364 = pneg %p114
        %p365 = pneg %p111
        %p366 = scmp.lt.s32.totalorder %s31, 1
        %s367 = scalar_select %p366, %s31, 1
        %s368 = scalar_lea.vmem %s3, %s367
        %p369 = pneg %p140
        %p370 = pneg %p137
        %p371 = pneg %p161
        %p372 = pneg %p158
        %p373 = pneg %p182
        %p374 = pneg %p179
        %p375 = pneg %p210
        %p376 = pneg %p207
        %s377 = sand.u32 %s197, 1
        %s378 = scalar_lea.sflag [#allocation4], %s377
        %s379 = sand.u32 %s197, 1
        %s380 = smul.addr %s379, 8
        %s381 = scalar_lea.vmem [#allocation10], %s380
        %p382 = scmp.lt.s32.totalorder %s31, 1
        %s383 = scalar_select %p382, %s31, 1
        %s384 = scalar_lea.vmem %s3, %s383
        %v385 = vld [vmem:[#allocation8] sm:$0xff]
        %v386 = vld [vmem:[#allocation8 + $0x8] sm:$0xff]
        %v387 = vld [vmem:[#allocation8 + $0x10] sm:$0xff]
        %v388 = vld [vmem:[#allocation8 + $0x18] sm:$0xff]
        %v389 = vld [vmem:[%s5] sm:$0x1]
        %v390 = vld [vmem:[%s318] sm:$0xff]
        %v392 = vlaneseq
        %v393 = vshrl.u32 %v392, 7
        %v394 = vsub.s32 0, %v393
        %v395 = vrot.slane %v389, %v394
        %vm397 = vcmask 261120
        %v399 = vsel %vm397, %v390, 0
        %401 = vmatprep.subr.mxu0 0.0
        %402 = vmatpush1.msra.mxu0 %v385
        %403 = vmatprep.subr.mxu0 0.0
        %404 = vmatpush1.msra.mxu0 %v386
        %405 = vmatprep.subr.mxu0 0.0
        %406 = vmatpush1.msra.mxu0 %v387
        %407 = vmatprep.subr.mxu0 0.0
        %408 = vmatpush1.msra.mxu0 %v388
        %409 = vmatprep.subr.mxu0 0.0
        %410 = vmatpush1.msra.mxu0 0.0
        %411 = vmatprep.subr.mxu0 0.0
        %412 = vmatpush1.msra.mxu0 0.0
        %413 = vmatprep.subr.mxu0 0.0
        %414 = vmatpush1.msra.mxu0 0.0
        %415 = vmatprep.subr.mxu0 0.0
        %416 = vmatpush1.msra.mxu0 0.0
        %417 = vmatprep.subr.mxu0 0.0
        %418 = vmatpush1.msra.mxu0 0.0
        %419 = vmatprep.subr.mxu0 0.0
        %420 = vmatpush1.msra.mxu0 0.0
        %421 = vmatprep.subr.mxu0 0.0
        %422 = vmatpush1.msra.mxu0 0.0
        %423 = vmatprep.subr.mxu0 0.0
        %424 = vmatpush1.msra.mxu0 0.0
        %425 = vmatprep.subr.mxu0 0.0
        %426 = vmatpush1.msra.mxu0 0.0
        %427 = vmatprep.subr.mxu0 0.0
        %428 = vmatpush1.msra.mxu0 0.0
        %429 = vmatprep.subr.mxu0 0.0
        %430 = vmatpush1.msra.mxu0 0.0
        %431 = vmatprep.subr.mxu0 0.0
        %432 = vmatpush1.msra.mxu0 0.0
        %433 = vmatprep.subr.mxu0 0.0
        %434 = vmatpush1.msra.mxu0 0.0
        %435 = vmatprep.subr.mxu0 0.0
        %436 = vmatpush1.msra.mxu0 0.0
        %437 = vmatprep.subr.mxu0 0.0
        %438 = vmatpush1.msra.mxu0 0.0
        %439 = vmatprep.subr.mxu0 0.0
        %440 = vmatpush1.msra.mxu0 0.0
        %441 = vmatprep.subr.mxu0 0.0
        %442 = vmatpush1.msra.mxu0 0.0
        %443 = vmatprep.subr.mxu0 0.0
        %444 = vmatpush1.msra.mxu0 0.0
        %445 = vmatprep.subr.mxu0 0.0
        %446 = vmatpush1.msra.mxu0 0.0
        %447 = vmatprep.subr.mxu0 0.0
        %448 = vmatpush1.msra.mxu0 0.0
        %449 = vmatprep.subr.mxu0 0.0
        %450 = vmatpush1.msra.mxu0 0.0
        %451 = vmatprep.subr.mxu0 0.0
        %452 = vmatpush1.msra.mxu0 0.0
        %453 = vmatprep.subr.mxu0 0.0
        %454 = vmatpush1.msra.mxu0 0.0
        %455 = vmatprep.subr.mxu0 0.0
        %456 = vmatpush1.msra.mxu0 0.0
        %457 = vmatprep.subr.mxu0 0.0
        %458 = vmatpush1.msra.mxu0 0.0
        %459 = vmatprep.subr.mxu0 0.0
        %460 = vmatpush1.msra.mxu0 0.0
        %461 = vmatprep.subr.mxu0 0.0
        %462 = vmatpush1.msra.mxu0 0.0
        %463 = vmatprep.subr.mxu0 0.0
        %464 = vmatpush1.msra.mxu0 0.0
        %465 = vmatprep.mubr.f32.mxu0 0.0
        %466 = vmatmul.mubr.f32.gmra.mrb[0].mxu0 %v399
        %v467 = vpop.f32.mrb[0].mxu0
        %v468 = vadd.f32 %v395, %v467
        %v469 = vpop.f32.mrb[0].mxu0
        %470 = vdwg.mxu0
        %v471 = vmax.f32 %v468, 0.0
        %v472 = vld [vmem:[%s327] sm:$0xff]
        %v474 = vsel %vm397, %v472, 0
        %476 = vmatprep.subr.mxu0 0.0
        %477 = vmatpush1.msra.mxu0 %v385
        %478 = vmatprep.subr.mxu0 0.0
        %479 = vmatpush1.msra.mxu0 %v386
        %480 = vmatprep.subr.mxu0 0.0
        %481 = vmatpush1.msra.mxu0 %v387
        %482 = vmatprep.subr.mxu0 0.0
        %483 = vmatpush1.msra.mxu0 %v388
        %484 = vmatprep.subr.mxu0 0.0
        %485 = vmatpush1.msra.mxu0 0.0
        %486 = vmatprep.subr.mxu0 0.0
        %487 = vmatpush1.msra.mxu0 0.0
        %488 = vmatprep.subr.mxu0 0.0
        %489 = vmatpush1.msra.mxu0 0.0
        %490 = vmatprep.subr.mxu0 0.0
        %491 = vmatpush1.msra.mxu0 0.0
        %492 = vmatprep.subr.mxu0 0.0
        %493 = vmatpush1.msra.mxu0 0.0
        %494 = vmatprep.subr.mxu0 0.0
        %495 = vmatpush1.msra.mxu0 0.0
        %496 = vmatprep.subr.mxu0 0.0
        %497 = vmatpush1.msra.mxu0 0.0
        %498 = vmatprep.subr.mxu0 0.0
        %499 = vmatpush1.msra.mxu0 0.0
        %500 = vmatprep.subr.mxu0 0.0
        %501 = vmatpush1.msra.mxu0 0.0
        %502 = vmatprep.subr.mxu0 0.0
        %503 = vmatpush1.msra.mxu0 0.0
        %504 = vmatprep.subr.mxu0 0.0
        %505 = vmatpush1.msra.mxu0 0.0
        %506 = vmatprep.subr.mxu0 0.0
        %507 = vmatpush1.msra.mxu0 0.0
        %508 = vmatprep.subr.mxu0 0.0
        %509 = vmatpush1.msra.mxu0 0.0
        %510 = vmatprep.subr.mxu0 0.0
        %511 = vmatpush1.msra.mxu0 0.0
        %512 = vmatprep.subr.mxu0 0.0
        %513 = vmatpush1.msra.mxu0 0.0
        %514 = vmatprep.subr.mxu0 0.0
        %515 = vmatpush1.msra.mxu0 0.0
        %516 = vmatprep.subr.mxu0 0.0
        %517 = vmatpush1.msra.mxu0 0.0
        %518 = vmatprep.subr.mxu0 0.0
        %519 = vmatpush1.msra.mxu0 0.0
        %520 = vmatprep.subr.mxu0 0.0
        %521 = vmatpush1.msra.mxu0 0.0
        %522 = vmatprep.subr.mxu0 0.0
        %523 = vmatpush1.msra.mxu0 0.0
        %524 = vmatprep.subr.mxu0 0.0
        %525 = vmatpush1.msra.mxu0 0.0
        %526 = vmatprep.subr.mxu0 0.0
        %527 = vmatpush1.msra.mxu0 0.0
        %528 = vmatprep.subr.mxu0 0.0
        %529 = vmatpush1.msra.mxu0 0.0
        %530 = vmatprep.subr.mxu0 0.0
        %531 = vmatpush1.msra.mxu0 0.0
        %532 = vmatprep.subr.mxu0 0.0
        %533 = vmatpush1.msra.mxu0 0.0
        %534 = vmatprep.subr.mxu0 0.0
        %535 = vmatpush1.msra.mxu0 0.0
        %536 = vmatprep.subr.mxu0 0.0
        %537 = vmatpush1.msra.mxu0 0.0
        %538 = vmatprep.subr.mxu0 0.0
        %539 = vmatpush1.msra.mxu0 0.0
        %540 = vmatprep.mubr.f32.mxu0 0.0
        %541 = vmatmul.mubr.f32.gmra.mrb[0].mxu0 %v474
        %v542 = vpop.f32.mrb[0].mxu0
        %v543 = vadd.f32 %v395, %v542
        %v544 = vpop.f32.mrb[0].mxu0
        %545 = vdwg.mxu0
        %v546 = vmax.f32 %v543, 0.0
        %v548 = vsel %vm397, %v471, 0
        %v551 = vsel %vm397, %v546, 0
        %553 = vmatprep.subr.mxu0 0.0
        %554 = vmatpush1.xpose.msra.mxu0 %v551
        %555 = vmatprep.subr.mxu0 0.0
        %556 = vmatpush1.xpose.msra.mxu0 0.0
        %557 = vmatprep.subr.mxu0 0.0
        %558 = vmatpush1.xpose.msra.mxu0 0.0
        %559 = vmatprep.subr.mxu0 0.0
        %560 = vmatpush1.xpose.msra.mxu0 0.0
        %561 = vmatprep.subr.mxu0 0.0
        %562 = vmatpush1.xpose.msra.mxu0 0.0
        %563 = vmatprep.subr.mxu0 0.0
        %564 = vmatpush1.xpose.msra.mxu0 0.0
        %565 = vmatprep.subr.mxu0 0.0
        %566 = vmatpush1.xpose.msra.mxu0 0.0
        %567 = vmatprep.subr.mxu0 0.0
        %568 = vmatpush1.xpose.msra.mxu0 0.0
        %569 = vmatprep.subr.mxu0 0.0
        %570 = vmatpush1.xpose.msra.mxu0 0.0
        %571 = vmatprep.subr.mxu0 0.0
        %572 = vmatpush1.xpose.msra.mxu0 0.0
        %573 = vmatprep.subr.mxu0 0.0
        %574 = vmatpush1.xpose.msra.mxu0 0.0
        %575 = vmatprep.subr.mxu0 0.0
        %576 = vmatpush1.xpose.msra.mxu0 0.0
        %577 = vmatprep.subr.mxu0 0.0
        %578 = vmatpush1.xpose.msra.mxu0 0.0
        %579 = vmatprep.subr.mxu0 0.0
        %580 = vmatpush1.xpose.msra.mxu0 0.0
        %581 = vmatprep.subr.mxu0 0.0
        %582 = vmatpush1.xpose.msra.mxu0 0.0
        %583 = vmatprep.subr.mxu0 0.0
        %584 = vmatpush1.xpose.msra.mxu0 0.0
        %585 = vmatprep.subr.mxu0 0.0
        %586 = vmatpush1.xpose.msra.mxu0 0.0
        %587 = vmatprep.subr.mxu0 0.0
        %588 = vmatpush1.xpose.msra.mxu0 0.0
        %589 = vmatprep.subr.mxu0 0.0
        %590 = vmatpush1.xpose.msra.mxu0 0.0
        %591 = vmatprep.subr.mxu0 0.0
        %592 = vmatpush1.xpose.msra.mxu0 0.0
        %593 = vmatprep.subr.mxu0 0.0
        %594 = vmatpush1.xpose.msra.mxu0 0.0
        %595 = vmatprep.subr.mxu0 0.0
        %596 = vmatpush1.xpose.msra.mxu0 0.0
        %597 = vmatprep.subr.mxu0 0.0
        %598 = vmatpush1.xpose.msra.mxu0 0.0
        %599 = vmatprep.subr.mxu0 0.0
        %600 = vmatpush1.xpose.msra.mxu0 0.0
        %601 = vmatprep.subr.mxu0 0.0
        %602 = vmatpush1.xpose.msra.mxu0 0.0
        %603 = vmatprep.subr.mxu0 0.0
        %604 = vmatpush1.xpose.msra.mxu0 0.0
        %605 = vmatprep.subr.mxu0 0.0
        %606 = vmatpush1.xpose.msra.mxu0 0.0
        %607 = vmatprep.subr.mxu0 0.0
        %608 = vmatpush1.xpose.msra.mxu0 0.0
        %609 = vmatprep.subr.mxu0 0.0
        %610 = vmatpush1.xpose.msra.mxu0 0.0
        %611 = vmatprep.subr.mxu0 0.0
        %612 = vmatpush1.xpose.msra.mxu0 0.0
        %613 = vmatprep.subr.mxu0 0.0
        %614 = vmatpush1.xpose.msra.mxu0 0.0
        %615 = vmatprep.subr.mxu0 0.0
        %616 = vmatpush1.xpose.msra.mxu0 0.0
        %617 = vmatprep.mubr.f32.mxu0 0.0
        %618 = vmatmul.mubr.f32.gmra.mrb[0].mxu0 %v548
        %v619 = vpop.f32.mrb[0].mxu0
        %v620 = vadd.f32 0.0, %v619
        %v621 = vpop.f32.mrb[0].mxu0
        %622 = vdwg.mxu0
        %v623 = vld [vmem:[%s384] sm:$0x1]
        %vm624 = vcmp.gt.f32.partialorder %v623, 0.5
        %v625 = vsel %vm624, 1, 0
        %v626 = vlaneseq
        %v627 = vshrl.u32 %v626, 7
        %v628 = vsub.s32 0, %v627
        %v629 = vrot.slane %v625, %v628
        %vm630 = vcmp.eq.s32.totalorder %v629, 1
        %v631 = vsel %vm630, -inf, %v620
        %vm632 = vcmask 64512
        %v633 = vsel %vm632, %v631, -inf
        %634 = vmax.xlane.f32.xlu0 %v633
        %v635 = vpop.xlane.xlu0 %634
        %v636 = vsub.f32 %v631, %v635
        %v637 = vmul.f32 %v636, 1.442695
        %v638 = vpow.pop %v637
        %v639 = vsel %vm632, %v638, 0.0
        %640 = vadd.xlane.f32.xlu0 %v639
        %v641 = vpop.xlane.xlu0 %640
        %v642 = vrcp.pop %v641
        %v643 = vmul.f32 %v638, %v642
        %v644 = vld [vmem:[%s336] sm:$0xff]
        %v646 = vsel %vm632, %v643, 0
        %648 = vmatprep.subr.mxu0 0.0
        %649 = vmatpush1.msra.mxu0 %v644
        %650 = vmatprep.subr.mxu0 0.0
        %651 = vmatpush1.msra.mxu0 0.0
        %652 = vmatprep.subr.mxu0 0.0
        %653 = vmatpush1.msra.mxu0 0.0
        %654 = vmatprep.subr.mxu0 0.0
        %655 = vmatpush1.msra.mxu0 0.0
        %656 = vmatprep.subr.mxu0 0.0
        %657 = vmatpush1.msra.mxu0 0.0
        %658 = vmatprep.subr.mxu0 0.0
        %659 = vmatpush1.msra.mxu0 0.0
        %660 = vmatprep.subr.mxu0 0.0
        %661 = vmatpush1.msra.mxu0 0.0
        %662 = vmatprep.subr.mxu0 0.0
        %663 = vmatpush1.msra.mxu0 0.0
        %664 = vmatprep.subr.mxu0 0.0
        %665 = vmatpush1.msra.mxu0 0.0
        %666 = vmatprep.subr.mxu0 0.0
        %667 = vmatpush1.msra.mxu0 0.0
        %668 = vmatprep.subr.mxu0 0.0
        %669 = vmatpush1.msra.mxu0 0.0
        %670 = vmatprep.subr.mxu0 0.0
        %671 = vmatpush1.msra.mxu0 0.0
        %672 = vmatprep.subr.mxu0 0.0
        %673 = vmatpush1.msra.mxu0 0.0
        %674 = vmatprep.subr.mxu0 0.0
        %675 = vmatpush1.msra.mxu0 0.0
        %676 = vmatprep.subr.mxu0 0.0
        %677 = vmatpush1.msra.mxu0 0.0
        %678 = vmatprep.subr.mxu0 0.0
        %679 = vmatpush1.msra.mxu0 0.0
        %680 = vmatprep.subr.mxu0 0.0
        %681 = vmatpush1.msra.mxu0 0.0
        %682 = vmatprep.subr.mxu0 0.0
        %683 = vmatpush1.msra.mxu0 0.0
        %684 = vmatprep.subr.mxu0 0.0
        %685 = vmatpush1.msra.mxu0 0.0
        %686 = vmatprep.subr.mxu0 0.0
        %687 = vmatpush1.msra.mxu0 0.0
        %688 = vmatprep.subr.mxu0 0.0
        %689 = vmatpush1.msra.mxu0 0.0
        %690 = vmatprep.subr.mxu0 0.0
        %691 = vmatpush1.msra.mxu0 0.0
        %692 = vmatprep.subr.mxu0 0.0
        %693 = vmatpush1.msra.mxu0 0.0
        %694 = vmatprep.subr.mxu0 0.0
        %695 = vmatpush1.msra.mxu0 0.0
        %696 = vmatprep.subr.mxu0 0.0
        %697 = vmatpush1.msra.mxu0 0.0
        %698 = vmatprep.subr.mxu0 0.0
        %699 = vmatpush1.msra.mxu0 0.0
        %700 = vmatprep.subr.mxu0 0.0
        %701 = vmatpush1.msra.mxu0 0.0
        %702 = vmatprep.subr.mxu0 0.0
        %703 = vmatpush1.msra.mxu0 0.0
        %704 = vmatprep.subr.mxu0 0.0
        %705 = vmatpush1.msra.mxu0 0.0
        %706 = vmatprep.subr.mxu0 0.0
        %707 = vmatpush1.msra.mxu0 0.0
        %708 = vmatprep.subr.mxu0 0.0
        %709 = vmatpush1.msra.mxu0 0.0
        %710 = vmatprep.subr.mxu0 0.0
        %711 = vmatpush1.msra.mxu0 0.0
        %712 = vmatprep.mubr.f32.mxu0 0.0
        %713 = vmatmul.mubr.f32.gmra.mrb[0].mxu0 %v646
        %v714 = vpop.f32.mrb[0].mxu0
        %v715 = vadd.f32 0.0, %v714
        %v716 = vpop.f32.mrb[0].mxu0
        %717 = vdwg.mxu0
        %718 = vst.msk [vmem:[%s381] sm:$0xff] %vm397, %v715
        %s719 = sand.u32 %s197, 1
        %s720 = scalar_lea.sflag [#allocation4], %s719
        %s721 = sand.u32 %s197, 1
        %s722 = smul.addr %s721, 8
        %s723 = scalar_lea.vmem [#allocation10], %s722
        // Predicated region
        $region61: #{tpu_custom_call.1} parent=43 // pred_check
          %p724 = pneg %p207
        $region62: #{tpu_custom_call.1} parent=43 // pred_check_branch
          %726 = sbr.rel (%p724) target = $region64
        $region63: #{tpu_custom_call.1} parent=43 // pred_region
          %s728 = ssub.s32 128, 128
          %729 = vsyncadd %s720, %s728
          %s730 = smul.addr %s31, 2
          %s731 = sadd.s32 %s32, %s730
          %s732 = smul.addr %s731, 128
          %s733 = scalar_lea.hbm %s6, %s732
          %s735 = sshll.u32 %s723, 4
          %s736 = int_to_ptr.vmem [resolvable:$true] %s735
          %738 = dma.vmem_to_hbm [thread:$0]  %s736, 128, %s733, %s720
        $region64: #{tpu_custom_call.1} parent=43 // pred_fallthru
          _
      $region44: #{tpu_custom_call.1} parent=5 // pred_fallthru
        _
      %p739 = scmp.le.s32.totalorder 2, %s22
      // Predicated region
      $region65: #{tpu_custom_call.1} parent=5 // pred_check
        %p740 = pneg %p739
      $region66: #{tpu_custom_call.1} parent=5 // pred_check_branch
        %742 = sbr.rel (%p740) target = $region68
      $region67: #{tpu_custom_call.1} parent=5 // pred_region
        %s743 = ssub.s32 %s22, 2
        // Predicated region
        $region69: #{tpu_custom_call.1} parent=67 // pred_check
          %p744 = pneg %p213
        $region70: #{tpu_custom_call.1} parent=67 // pred_check_branch
          %746 = sbr.rel (%p744) target = $region72
        $region71: #{tpu_custom_call.1} parent=67 // pred_region
          %s747 = sand.u32 %s198, 1
          %s748 = scalar_lea.sflag [#allocation4], %s747
          %s749 = sand.u32 %s198, 1
          %s750 = smul.addr %s749, 8
          %s751 = scalar_lea.vmem [#allocation10], %s750
          %752 = dma.done %s748, 128
        $region72: #{tpu_custom_call.1} parent=67 // pred_fallthru
          _
      $region68: #{tpu_custom_call.1} parent=5 // pred_fallthru
        _
    $region6: #{tpu_custom_call.1} parent=1 // loop_footer
      %s26 = sadd.s32 1, %s22
    $region7: #{tpu_custom_call.1} parent=1 // loop_footer_branch
      %21 = sbr.rel target = $region3
    $region8: #{tpu_custom_call.1} parent=1 // loop_exit
      _
    %753 = vsyncpa [#allocation3], 1
    %s754 = scalar_lea.sflag [#allocation3], 1
    %755 = vsyncpa %s754, 1
    %756 = vsyncpa [#allocation6], 1
    %s757 = scalar_lea.sflag [#allocation6], 1
    %758 = vsyncpa %s757, 1
    %759 = vsyncpa [#allocation9], 1
    %760 = vsyncpa [#allocation4], 1
    %s761 = scalar_lea.sflag [#allocation4], 1
    %762 = vsyncpa %s761, 1

</llo_original>
